<compile_context>
chip_gen: v7x
topology: tpu7x:2x2x1
jax: 0.10.0
libtpu: 0.0.40
codegen_flags: <defaults>
</compile_context>

<pallas_src>
import functools
import math

import jax
import jax.numpy as jnp
from jax.experimental import pallas as pl
from jax.experimental.pallas import tpu as pltpu

_LANE = 128  # lane tile (last dim) — pad class_num to a multiple of this


def _relu_fc_kernel(x_ref, w_ref, b_ref, o_ref):
    # Fused ReLU on the input block (VPU; free while DMA-bound).
    x = jnp.maximum(x_ref[...], 0.0)
    # w_ref is pre-transposed to (K, N_pad): plain (B,K)@(K,N) matmul lowers
    # straight to MXU weight pushes with no per-call relayout.
    acc = jnp.dot(x, w_ref[...], preferred_element_type=jnp.float32)
    o_ref[...] = acc + b_ref[...]


def prepare_fc_params(weight, bias):
    """One-time (amortized) layout prep.

    weight: (N, K) PyTorch nn.Linear layout.  bias: (N,).
    Returns:
      w_t : (K, N_pad) float32  — transposed + N padded to a multiple of 128
      b_p : (1, N_pad) float32  — bias padded to match
    """
    n, k = weight.shape
    n_pad = pl.cdiv(n, _LANE) * _LANE
    # Pad N, then transpose so the kernel sees the MXU-native (K, N) layout.
    w_t = jnp.pad(weight, ((0, n_pad - n), (0, 0))).T  # (K, N_pad)
    b_p = jnp.pad(bias, (0, n_pad - n)).reshape(1, n_pad)
    # NOTE: casting w_t to bfloat16 here would halve the dominant (weight)
    # HBM traffic; kept f32 to preserve the 1e-4 numerics check.
    return w_t, b_p


@functools.partial(jax.jit, static_argnames=("class_num",))
def relu_fc_forward(x, w_t, b_padded, *, class_num):
    """x: (B, K) float32; w_t (K, N_pad) / b_padded (1, N_pad) from prepare_fc_params."""
    b, k = x.shape
    k2, n_pad = w_t.shape
    assert k == k2, "feature dim mismatch"

    out = pl.pallas_call(
        _relu_fc_kernel,
        out_shape=jax.ShapeDtypeStruct((b, n_pad), jnp.float32),
        in_specs=[
            pl.BlockSpec(memory_space=pltpu.MemorySpace.VMEM),  # x (whole)
            pl.BlockSpec(memory_space=pltpu.MemorySpace.VMEM),  # weight (K, N_pad)
            pl.BlockSpec(memory_space=pltpu.MemorySpace.VMEM),  # bias (1, N_pad)
        ],
        out_specs=pl.BlockSpec(memory_space=pltpu.MemorySpace.VMEM),
    )(x, w_t, b_padded)

    return out[:, :class_num]


def init_fc_params(key, in_features=512, out_features=365):
    """Deterministic init mirroring nn.Linear's default (uniform +/- 1/sqrt(fan_in))."""
    k_w, k_b = jax.random.split(key)
    bound = 1.0 / math.sqrt(in_features)
    weight = jax.random.uniform(
        k_w, (out_features, in_features), jnp.float32, -bound, bound
    )
    bias = jax.random.uniform(k_b, (out_features,), jnp.float32, -bound, bound)
    return weight, bias


if __name__ == "__main__":
    INPUT_LEN = 512
    CLASS_NUM = 365
    BATCH = 4

    key = jax.random.PRNGKey(0)
    k_x, k_p = jax.random.split(key)

    x = jax.random.normal(k_x, (BATCH, INPUT_LEN), jnp.float32)
    weight, bias = init_fc_params(k_p, INPUT_LEN, CLASS_NUM)

    # Amortized, one-time layout prep (pad N to lane multiple + transpose).
    w_t, b_padded = prepare_fc_params(weight, bias)

    out = relu_fc_forward(x, w_t, b_padded, class_num=CLASS_NUM)
    out = jax.block_until_ready(out)

    # Reference: same math as the PyTorch module (ReLU then Linear).
    ref = jnp.maximum(x, 0.0) @ weight.T + bias
    assert out.shape == (BATCH, CLASS_NUM)
    assert jnp.allclose(out, ref, atol=1e-4, rtol=1e-4)

    print("KERNEL_OK")
</pallas_src>

<mosaic_0001>
module attributes {stable_mosaic.version = 11 : i64} {
  func.func @_relu_fc_kernel(%arg0: memref<4x512xf32, #tpu.memory_space<vmem>>, %arg1: memref<512x384xf32, #tpu.memory_space<vmem>>, %arg2: memref<1x384xf32, #tpu.memory_space<vmem>>, %arg3: memref<4x384xf32, #tpu.memory_space<vmem>>) attributes {dimension_semantics = [], scalar_prefetch = 0 : i64, scratch_operands = 0 : i64, tpu.core_type = #tpu.core_type<tc>} {
    %c0 = arith.constant 0 : index
    %c0_0 = arith.constant 0 : index
    %0 = vector.load %arg0[%c0, %c0_0] : memref<4x512xf32, #tpu.memory_space<vmem>>, vector<4x512xf32>
    %cst = arith.constant 0.000000e+00 : f32
    %1 = vector.broadcast %cst : f32 to vector<4x512xf32>
    %2 = arith.maximumf %0, %1 : vector<4x512xf32>
    %c0_1 = arith.constant 0 : index
    %c0_2 = arith.constant 0 : index
    %3 = vector.load %arg1[%c0_1, %c0_2] : memref<512x384xf32, #tpu.memory_space<vmem>>, vector<512x384xf32>
    %cst_3 = arith.constant dense<0.000000e+00> : vector<4x384xf32>
    %4 = tpu.matmul %2, %3, %cst_3 {dimension_numbers = #tpu.dot_dimension_numbers<[1], [0], [0], [1], [0, 0, 1, 1], [], []>} : vector<4x512xf32>, vector<512x384xf32>, vector<4x384xf32> -> vector<4x384xf32>
    %c0_4 = arith.constant 0 : index
    %c0_5 = arith.constant 0 : index
    %5 = vector.load %arg2[%c0_4, %c0_5] : memref<1x384xf32, #tpu.memory_space<vmem>>, vector<1x384xf32>
    %6 = vector.broadcast %5 : vector<1x384xf32> to vector<4x384xf32>
    %7 = arith.addf %4, %6 : vector<4x384xf32>
    %c0_6 = arith.constant 0 : index
    %c0_7 = arith.constant 0 : index
    %8 = vector.load %arg3[%c0_6, %c0_7] : memref<4x384xf32, #tpu.memory_space<vmem>>, vector<4x384xf32>
    tpu.vector_store %arg3[%c0_6, %c0_7], %7 {strides = array<i32>} : memref<4x384xf32, #tpu.memory_space<vmem>>, vector<4x384xf32>,
    return
  }
}

</mosaic_0001>

<llo_original>
// kernel: relu_fc_forward.1
$region0: #{relu_fc_forward.1}
  #allocation0 [shape = 'u32[]', space=smem, size = 0x4, offset = 0x4, fixed_abs, tag = 'smem constant byte address 0x4 - core index']
  #allocation1 [shape = 'u32[144,128]{1,0:T(1,128)}', space=vmem, size = 0x12000, scoped, tag = 'internal scratch']
  %s0 = inlined_call_operand.hbm [shape: f32[4,512], index: 0, kind: input, shape index: {}]
  %s1 = inlined_call_operand.hbm [shape: f32[512,384], index: 1, kind: input, shape index: {}]
  %s2 = inlined_call_operand.vmem [shape: f32[1,384], index: 2, kind: input, shape index: {}]
  %s3 = inlined_call_operand.hbm [shape: f32[4,384], index: 3, kind: output, shape index: {}]
  %s4 = sld [smem:[#allocation0]]
  $region30: #{relu_fc_forward.1} parent=0
    _
  %s6 = ssub.s32 1, %s4
  %s7 = scalar_select 0, %s6, %s4
  $region1: #{relu_fc_forward.1} parent=0
    #allocation2 [shape = 'u8[8192]{0}', space=vmem, size = 0x2000, scoped, tag = 'input window, operand 0, single buffered']
    #allocation3 [shape = 's32[1]{0}', space=sflag, size = 0x4, scoped, tag = 'scoped memory for relu_fc_forward.1']
    #allocation4 [shape = 's32[1]{0}', space=sflag, size = 0x4, scoped, tag = 'scoped memory for relu_fc_forward.1']
    #allocation5 [shape = 'u8[786432]{0}', space=vmem, size = 0xc0000, scoped, tag = 'input window, operand 1, single buffered']
    #allocation6 [shape = 's32[1]{0}', space=sflag, size = 0x4, scoped, tag = 'scoped memory for relu_fc_forward.1']
    #allocation7 [shape = 'u8[6144]{0}', space=vmem, size = 0x1800, scoped, tag = 'output window, operand 0, single buffered']
    %8 = vsyncpa [#allocation3], 0
    %9 = vsyncpa [#allocation6], 0
    %10 = vsyncpa [#allocation4], 0
    // Predicated region
    $region2: #{relu_fc_forward.1} parent=1 // pred_check
      _
    $region3: #{relu_fc_forward.1} parent=1 // pred_check_branch
      %12 = sbr.rel (0) target = $region5
    $region4: #{relu_fc_forward.1} parent=1 // pred_region
      %s14 = ssub.s32 256, 256
      %15 = vsyncadd [#allocation3], %s14
      %s17 = sshll.u32 [#allocation2], 4
      %s18 = int_to_ptr.vmem [resolvable:$true] %s17
      %20 = dma.hbm_to_vmem [thread:$0]  %s0, 256, %s18, [#allocation3]
    $region5: #{relu_fc_forward.1} parent=1 // pred_fallthru
      _
    // Predicated region
    $region6: #{relu_fc_forward.1} parent=1 // pred_check
      _
    $region7: #{relu_fc_forward.1} parent=1 // pred_check_branch
      %22 = sbr.rel (0) target = $region9
    $region8: #{relu_fc_forward.1} parent=1 // pred_region
      %s24 = ssub.s32 24576, 24576
      %25 = vsyncadd [#allocation6], %s24
      %s26 = sshll.u32 [#allocation5], 4
      %s27 = int_to_ptr.vmem [resolvable:$true] %s26
      %32 = dma.hbm_to_vmem [thread:$0]  %s1, 24576, %s27, [#allocation6], 384, 384, 24
    $region9: #{relu_fc_forward.1} parent=1 // pred_fallthru
      _
    // Predicated region
    $region10: #{relu_fc_forward.1} parent=1 // pred_check
      _
    $region11: #{relu_fc_forward.1} parent=1 // pred_check_branch
      %34 = sbr.rel (0) target = $region13
    $region12: #{relu_fc_forward.1} parent=1 // pred_region
      _
    $region13: #{relu_fc_forward.1} parent=1 // pred_fallthru
      _
    // Predicated region
    $region14: #{relu_fc_forward.1} parent=1 // pred_check
      _
    $region15: #{relu_fc_forward.1} parent=1 // pred_check_branch
      %36 = sbr.rel (0) target = $region17
    $region16: #{relu_fc_forward.1} parent=1 // pred_region
      %37 = dma.done [#allocation3], 256
    $region17: #{relu_fc_forward.1} parent=1 // pred_fallthru
      _
    // Predicated region
    $region18: #{relu_fc_forward.1} parent=1 // pred_check
      _
    $region19: #{relu_fc_forward.1} parent=1 // pred_check_branch
      %39 = sbr.rel (0) target = $region21
    $region20: #{relu_fc_forward.1} parent=1 // pred_region
      %40 = dma.done [#allocation6], 24576
    $region21: #{relu_fc_forward.1} parent=1 // pred_fallthru
      _
    %v41 = vld [vmem:[#allocation2] sm:$0xff]
    %v42 = vld [vmem:[#allocation2 + $0x8] sm:$0xff]
    %v43 = vmax.f32 %v41, 0.0
    %v44 = vmax.f32 %v42, 0.0
    %v45 = vld [vmem:[#allocation5] sm:$0xff]
    %v46 = vld [vmem:[#allocation5 + $0x8] sm:$0xff]
    %v47 = vld [vmem:[#allocation5 + $0x10] sm:$0xff]
    %v48 = vld [vmem:[#allocation5 + $0x18] sm:$0xff]
    %v49 = vld [vmem:[#allocation5 + $0x20] sm:$0xff]
    %v50 = vld [vmem:[#allocation5 + $0x28] sm:$0xff]
    %v51 = vld [vmem:[#allocation5 + $0x30] sm:$0xff]
    %v52 = vld [vmem:[#allocation5 + $0x38] sm:$0xff]
    %v53 = vld [vmem:[#allocation5 + $0x40] sm:$0xff]
    %v54 = vld [vmem:[#allocation5 + $0x48] sm:$0xff]
    %v55 = vld [vmem:[#allocation5 + $0x50] sm:$0xff]
    %v56 = vld [vmem:[#allocation5 + $0x58] sm:$0xff]
    %v57 = vld [vmem:[#allocation5 + $0x60] sm:$0xff]
    %v58 = vld [vmem:[#allocation5 + $0x68] sm:$0xff]
    %v59 = vld [vmem:[#allocation5 + $0x70] sm:$0xff]
    %v60 = vld [vmem:[#allocation5 + $0x78] sm:$0xff]
    %v61 = vld [vmem:[#allocation5 + $0x80] sm:$0xff]
    %v62 = vld [vmem:[#allocation5 + $0x88] sm:$0xff]
    %v63 = vld [vmem:[#allocation5 + $0x90] sm:$0xff]
    %v64 = vld [vmem:[#allocation5 + $0x98] sm:$0xff]
    %v65 = vld [vmem:[#allocation5 + $0xa0] sm:$0xff]
    %v66 = vld [vmem:[#allocation5 + $0xa8] sm:$0xff]
    %v67 = vld [vmem:[#allocation5 + $0xb0] sm:$0xff]
    %v68 = vld [vmem:[#allocation5 + $0xb8] sm:$0xff]
    %v69 = vld [vmem:[#allocation5 + $0xc0] sm:$0xff]
    %v70 = vld [vmem:[#allocation5 + $0xc8] sm:$0xff]
    %v71 = vld [vmem:[#allocation5 + $0xd0] sm:$0xff]
    %v72 = vld [vmem:[#allocation5 + $0xd8] sm:$0xff]
    %v73 = vld [vmem:[#allocation5 + $0xe0] sm:$0xff]
    %v74 = vld [vmem:[#allocation5 + $0xe8] sm:$0xff]
    %v75 = vld [vmem:[#allocation5 + $0xf0] sm:$0xff]
    %v76 = vld [vmem:[#allocation5 + $0xf8] sm:$0xff]
    %v77 = vld [vmem:[#allocation5 + $0x100] sm:$0xff]
    %v78 = vld [vmem:[#allocation5 + $0x108] sm:$0xff]
    %v79 = vld [vmem:[#allocation5 + $0x110] sm:$0xff]
    %v80 = vld [vmem:[#allocation5 + $0x118] sm:$0xff]
    %v81 = vld [vmem:[#allocation5 + $0x120] sm:$0xff]
    %v82 = vld [vmem:[#allocation5 + $0x128] sm:$0xff]
    %v83 = vld [vmem:[#allocation5 + $0x130] sm:$0xff]
    %v84 = vld [vmem:[#allocation5 + $0x138] sm:$0xff]
    %v85 = vld [vmem:[#allocation5 + $0x140] sm:$0xff]
    %v86 = vld [vmem:[#allocation5 + $0x148] sm:$0xff]
    %v87 = vld [vmem:[#allocation5 + $0x150] sm:$0xff]
    %v88 = vld [vmem:[#allocation5 + $0x158] sm:$0xff]
    %v89 = vld [vmem:[#allocation5 + $0x160] sm:$0xff]
    %v90 = vld [vmem:[#allocation5 + $0x168] sm:$0xff]
    %v91 = vld [vmem:[#allocation5 + $0x170] sm:$0xff]
    %v92 = vld [vmem:[#allocation5 + $0x178] sm:$0xff]
    %v93 = vld [vmem:[#allocation5 + $0x180] sm:$0xff]
    %v94 = vld [vmem:[#allocation5 + $0x188] sm:$0xff]
    %v95 = vld [vmem:[#allocation5 + $0x190] sm:$0xff]
    %v96 = vld [vmem:[#allocation5 + $0x198] sm:$0xff]
    %v97 = vld [vmem:[#allocation5 + $0x1a0] sm:$0xff]
    %v98 = vld [vmem:[#allocation5 + $0x1a8] sm:$0xff]
    %v99 = vld [vmem:[#allocation5 + $0x1b0] sm:$0xff]
    %v100 = vld [vmem:[#allocation5 + $0x1b8] sm:$0xff]
    %v101 = vld [vmem:[#allocation5 + $0x1c0] sm:$0xff]
    %v102 = vld [vmem:[#allocation5 + $0x1c8] sm:$0xff]
    %v103 = vld [vmem:[#allocation5 + $0x1d0] sm:$0xff]
    %v104 = vld [vmem:[#allocation5 + $0x1d8] sm:$0xff]
    %v105 = vld [vmem:[#allocation5 + $0x1e0] sm:$0xff]
    %v106 = vld [vmem:[#allocation5 + $0x1e8] sm:$0xff]
    %v107 = vld [vmem:[#allocation5 + $0x1f0] sm:$0xff]
    %v108 = vld [vmem:[#allocation5 + $0x1f8] sm:$0xff]
    %v109 = vld [vmem:[#allocation5 + $0x200] sm:$0xff]
    %v110 = vld [vmem:[#allocation5 + $0x208] sm:$0xff]
    %v111 = vld [vmem:[#allocation5 + $0x210] sm:$0xff]
    %v112 = vld [vmem:[#allocation5 + $0x218] sm:$0xff]
    %v113 = vld [vmem:[#allocation5 + $0x220] sm:$0xff]
    %v114 = vld [vmem:[#allocation5 + $0x228] sm:$0xff]
    %v115 = vld [vmem:[#allocation5 + $0x230] sm:$0xff]
    %v116 = vld [vmem:[#allocation5 + $0x238] sm:$0xff]
    %v117 = vld [vmem:[#allocation5 + $0x240] sm:$0xff]
    %v118 = vld [vmem:[#allocation5 + $0x248] sm:$0xff]
    %v119 = vld [vmem:[#allocation5 + $0x250] sm:$0xff]
    %v120 = vld [vmem:[#allocation5 + $0x258] sm:$0xff]
    %v121 = vld [vmem:[#allocation5 + $0x260] sm:$0xff]
    %v122 = vld [vmem:[#allocation5 + $0x268] sm:$0xff]
    %v123 = vld [vmem:[#allocation5 + $0x270] sm:$0xff]
    %v124 = vld [vmem:[#allocation5 + $0x278] sm:$0xff]
    %v125 = vld [vmem:[#allocation5 + $0x280] sm:$0xff]
    %v126 = vld [vmem:[#allocation5 + $0x288] sm:$0xff]
    %v127 = vld [vmem:[#allocation5 + $0x290] sm:$0xff]
    %v128 = vld [vmem:[#allocation5 + $0x298] sm:$0xff]
    %v129 = vld [vmem:[#allocation5 + $0x2a0] sm:$0xff]
    %v130 = vld [vmem:[#allocation5 + $0x2a8] sm:$0xff]
    %v131 = vld [vmem:[#allocation5 + $0x2b0] sm:$0xff]
    %v132 = vld [vmem:[#allocation5 + $0x2b8] sm:$0xff]
    %v133 = vld [vmem:[#allocation5 + $0x2c0] sm:$0xff]
    %v134 = vld [vmem:[#allocation5 + $0x2c8] sm:$0xff]
    %v135 = vld [vmem:[#allocation5 + $0x2d0] sm:$0xff]
    %v136 = vld [vmem:[#allocation5 + $0x2d8] sm:$0xff]
    %v137 = vld [vmem:[#allocation5 + $0x2e0] sm:$0xff]
    %v138 = vld [vmem:[#allocation5 + $0x2e8] sm:$0xff]
    %v139 = vld [vmem:[#allocation5 + $0x2f0] sm:$0xff]
    %v140 = vld [vmem:[#allocation5 + $0x2f8] sm:$0xff]
    %v141 = vld [vmem:[#allocation5 + $0x300] sm:$0xff]
    %v142 = vld [vmem:[#allocation5 + $0x308] sm:$0xff]
    %v143 = vld [vmem:[#allocation5 + $0x310] sm:$0xff]
    %v144 = vld [vmem:[#allocation5 + $0x318] sm:$0xff]
    %v145 = vld [vmem:[#allocation5 + $0x320] sm:$0xff]
    %v146 = vld [vmem:[#allocation5 + $0x328] sm:$0xff]
    %v147 = vld [vmem:[#allocation5 + $0x330] sm:$0xff]
    %v148 = vld [vmem:[#allocation5 + $0x338] sm:$0xff]
    %v149 = vld [vmem:[#allocation5 + $0x340] sm:$0xff]
    %v150 = vld [vmem:[#allocation5 + $0x348] sm:$0xff]
    %v151 = vld [vmem:[#allocation5 + $0x350] sm:$0xff]
    %v152 = vld [vmem:[#allocation5 + $0x358] sm:$0xff]
    %v153 = vld [vmem:[#allocation5 + $0x360] sm:$0xff]
    %v154 = vld [vmem:[#allocation5 + $0x368] sm:$0xff]
    %v155 = vld [vmem:[#allocation5 + $0x370] sm:$0xff]
    %v156 = vld [vmem:[#allocation5 + $0x378] sm:$0xff]
    %v157 = vld [vmem:[#allocation5 + $0x380] sm:$0xff]
    %v158 = vld [vmem:[#allocation5 + $0x388] sm:$0xff]
    %v159 = vld [vmem:[#allocation5 + $0x390] sm:$0xff]
    %v160 = vld [vmem:[#allocation5 + $0x398] sm:$0xff]
    %v161 = vld [vmem:[#allocation5 + $0x3a0] sm:$0xff]
    %v162 = vld [vmem:[#allocation5 + $0x3a8] sm:$0xff]
    %v163 = vld [vmem:[#allocation5 + $0x3b0] sm:$0xff]
    %v164 = vld [vmem:[#allocation5 + $0x3b8] sm:$0xff]
    %v165 = vld [vmem:[#allocation5 + $0x3c0] sm:$0xff]
    %v166 = vld [vmem:[#allocation5 + $0x3c8] sm:$0xff]
    %v167 = vld [vmem:[#allocation5 + $0x3d0] sm:$0xff]
    %v168 = vld [vmem:[#allocation5 + $0x3d8] sm:$0xff]
    %v169 = vld [vmem:[#allocation5 + $0x3e0] sm:$0xff]
    %v170 = vld [vmem:[#allocation5 + $0x3e8] sm:$0xff]
    %v171 = vld [vmem:[#allocation5 + $0x3f0] sm:$0xff]
    %v172 = vld [vmem:[#allocation5 + $0x3f8] sm:$0xff]
    %v173 = vld [vmem:[#allocation5 + $0x400] sm:$0xff]
    %v174 = vld [vmem:[#allocation5 + $0x408] sm:$0xff]
    %v175 = vld [vmem:[#allocation5 + $0x410] sm:$0xff]
    %v176 = vld [vmem:[#allocation5 + $0x418] sm:$0xff]
    %v177 = vld [vmem:[#allocation5 + $0x420] sm:$0xff]
    %v178 = vld [vmem:[#allocation5 + $0x428] sm:$0xff]
    %v179 = vld [vmem:[#allocation5 + $0x430] sm:$0xff]
    %v180 = vld [vmem:[#allocation5 + $0x438] sm:$0xff]
    %v181 = vld [vmem:[#allocation5 + $0x440] sm:$0xff]
    %v182 = vld [vmem:[#allocation5 + $0x448] sm:$0xff]
    %v183 = vld [vmem:[#allocation5 + $0x450] sm:$0xff]
    %v184 = vld [vmem:[#allocation5 + $0x458] sm:$0xff]
    %v185 = vld [vmem:[#allocation5 + $0x460] sm:$0xff]
    %v186 = vld [vmem:[#allocation5 + $0x468] sm:$0xff]
    %v187 = vld [vmem:[#allocation5 + $0x470] sm:$0xff]
    %v188 = vld [vmem:[#allocation5 + $0x478] sm:$0xff]
    %v189 = vld [vmem:[#allocation5 + $0x480] sm:$0xff]
    %v190 = vld [vmem:[#allocation5 + $0x488] sm:$0xff]
    %v191 = vld [vmem:[#allocation5 + $0x490] sm:$0xff]
    %v192 = vld [vmem:[#allocation5 + $0x498] sm:$0xff]
    %v193 = vld [vmem:[#allocation5 + $0x4a0] sm:$0xff]
    %v194 = vld [vmem:[#allocation5 + $0x4a8] sm:$0xff]
    %v195 = vld [vmem:[#allocation5 + $0x4b0] sm:$0xff]
    %v196 = vld [vmem:[#allocation5 + $0x4b8] sm:$0xff]
    %v197 = vld [vmem:[#allocation5 + $0x4c0] sm:$0xff]
    %v198 = vld [vmem:[#allocation5 + $0x4c8] sm:$0xff]
    %v199 = vld [vmem:[#allocation5 + $0x4d0] sm:$0xff]
    %v200 = vld [vmem:[#allocation5 + $0x4d8] sm:$0xff]
    %v201 = vld [vmem:[#allocation5 + $0x4e0] sm:$0xff]
    %v202 = vld [vmem:[#allocation5 + $0x4e8] sm:$0xff]
    %v203 = vld [vmem:[#allocation5 + $0x4f0] sm:$0xff]
    %v204 = vld [vmem:[#allocation5 + $0x4f8] sm:$0xff]
    %v205 = vld [vmem:[#allocation5 + $0x500] sm:$0xff]
    %v206 = vld [vmem:[#allocation5 + $0x508] sm:$0xff]
    %v207 = vld [vmem:[#allocation5 + $0x510] sm:$0xff]
    %v208 = vld [vmem:[#allocation5 + $0x518] sm:$0xff]
    %v209 = vld [vmem:[#allocation5 + $0x520] sm:$0xff]
    %v210 = vld [vmem:[#allocation5 + $0x528] sm:$0xff]
    %v211 = vld [vmem:[#allocation5 + $0x530] sm:$0xff]
    %v212 = vld [vmem:[#allocation5 + $0x538] sm:$0xff]
    %v213 = vld [vmem:[#allocation5 + $0x540] sm:$0xff]
    %v214 = vld [vmem:[#allocation5 + $0x548] sm:$0xff]
    %v215 = vld [vmem:[#allocation5 + $0x550] sm:$0xff]
    %v216 = vld [vmem:[#allocation5 + $0x558] sm:$0xff]
    %v217 = vld [vmem:[#allocation5 + $0x560] sm:$0xff]
    %v218 = vld [vmem:[#allocation5 + $0x568] sm:$0xff]
    %v219 = vld [vmem:[#allocation5 + $0x570] sm:$0xff]
    %v220 = vld [vmem:[#allocation5 + $0x578] sm:$0xff]
    %v221 = vld [vmem:[#allocation5 + $0x580] sm:$0xff]
    %v222 = vld [vmem:[#allocation5 + $0x588] sm:$0xff]
    %v223 = vld [vmem:[#allocation5 + $0x590] sm:$0xff]
    %v224 = vld [vmem:[#allocation5 + $0x598] sm:$0xff]
    %v225 = vld [vmem:[#allocation5 + $0x5a0] sm:$0xff]
    %v226 = vld [vmem:[#allocation5 + $0x5a8] sm:$0xff]
    %v227 = vld [vmem:[#allocation5 + $0x5b0] sm:$0xff]
    %v228 = vld [vmem:[#allocation5 + $0x5b8] sm:$0xff]
    %v229 = vld [vmem:[#allocation5 + $0x5c0] sm:$0xff]
    %v230 = vld [vmem:[#allocation5 + $0x5c8] sm:$0xff]
    %v231 = vld [vmem:[#allocation5 + $0x5d0] sm:$0xff]
    %v232 = vld [vmem:[#allocation5 + $0x5d8] sm:$0xff]
    %v233 = vld [vmem:[#allocation5 + $0x5e0] sm:$0xff]
    %v234 = vld [vmem:[#allocation5 + $0x5e8] sm:$0xff]
    %v235 = vld [vmem:[#allocation5 + $0x5f0] sm:$0xff]
    %v236 = vld [vmem:[#allocation5 + $0x5f8] sm:$0xff]
    %v237 = vld [vmem:[%s2] sm:$0x7]
    %v239 = vlaneseq
    %v240 = vshrl.u32 %v239, 7
    %v241 = vsub.s32 0, %v240
    %v242 = vrot.slane %v237, %v241
    %v243 = vlaneseq
    %v244 = vshrl.u32 %v243, 7
    %v245 = vsub.s32 1, %v244
    %v246 = vrot.slane %v237, %v245
    %v247 = vlaneseq
    %v248 = vshrl.u32 %v247, 7
    %v249 = vsub.s32 2, %v248
    %v250 = vrot.slane %v237, %v249
    %v256 = vcombine.high %v43, %v43
    %v257 = vcombine.high %v44, %v44
    %260 = vmatprep.subr.mxu0 %v46
    %261 = vmatpush1.msra.mxu0 %v45
    %262 = vmatprep.subr.mxu0 %v49
    %263 = vmatpush1.msra.mxu0 %v48
    %264 = vmatprep.subr.mxu0 %v52
    %265 = vmatpush1.msra.mxu0 %v51
    %266 = vmatprep.subr.mxu0 %v55
    %267 = vmatpush1.msra.mxu0 %v54
    %268 = vmatprep.subr.mxu0 %v58
    %269 = vmatpush1.msra.mxu0 %v57
    %270 = vmatprep.subr.mxu0 %v61
    %271 = vmatpush1.msra.mxu0 %v60
    %272 = vmatprep.subr.mxu0 %v64
    %273 = vmatpush1.msra.mxu0 %v63
    %274 = vmatprep.subr.mxu0 %v67
    %275 = vmatpush1.msra.mxu0 %v66
    %276 = vmatprep.subr.mxu0 %v70
    %277 = vmatpush1.msra.mxu0 %v69
    %278 = vmatprep.subr.mxu0 %v73
    %279 = vmatpush1.msra.mxu0 %v72
    %280 = vmatprep.subr.mxu0 %v76
    %281 = vmatpush1.msra.mxu0 %v75
    %282 = vmatprep.subr.mxu0 %v79
    %283 = vmatpush1.msra.mxu0 %v78
    %284 = vmatprep.subr.mxu0 %v82
    %285 = vmatpush1.msra.mxu0 %v81
    %286 = vmatprep.subr.mxu0 %v85
    %287 = vmatpush1.msra.mxu0 %v84
    %288 = vmatprep.subr.mxu0 %v88
    %289 = vmatpush1.msra.mxu0 %v87
    %290 = vmatprep.subr.mxu0 %v91
    %291 = vmatpush1.msra.mxu0 %v90
    %292 = vmatprep.subr.mxu0 %v94
    %293 = vmatpush1.msra.mxu0 %v93
    %294 = vmatprep.subr.mxu0 %v97
    %295 = vmatpush1.msra.mxu0 %v96
    %296 = vmatprep.subr.mxu0 %v100
    %297 = vmatpush1.msra.mxu0 %v99
    %298 = vmatprep.subr.mxu0 %v103
    %299 = vmatpush1.msra.mxu0 %v102
    %300 = vmatprep.subr.mxu0 %v106
    %301 = vmatpush1.msra.mxu0 %v105
    %302 = vmatprep.subr.mxu0 %v109
    %303 = vmatpush1.msra.mxu0 %v108
    %304 = vmatprep.subr.mxu0 %v112
    %305 = vmatpush1.msra.mxu0 %v111
    %306 = vmatprep.subr.mxu0 %v115
    %307 = vmatpush1.msra.mxu0 %v114
    %308 = vmatprep.subr.mxu0 %v118
    %309 = vmatpush1.msra.mxu0 %v117
    %310 = vmatprep.subr.mxu0 %v121
    %311 = vmatpush1.msra.mxu0 %v120
    %312 = vmatprep.subr.mxu0 %v124
    %313 = vmatpush1.msra.mxu0 %v123
    %314 = vmatprep.subr.mxu0 %v127
    %315 = vmatpush1.msra.mxu0 %v126
    %316 = vmatprep.subr.mxu0 %v130
    %317 = vmatpush1.msra.mxu0 %v129
    %318 = vmatprep.subr.mxu0 %v133
    %319 = vmatpush1.msra.mxu0 %v132
    %320 = vmatprep.subr.mxu0 %v136
    %321 = vmatpush1.msra.mxu0 %v135
    %322 = vmatprep.subr.mxu0 %v139
    %323 = vmatpush1.msra.mxu0 %v138
    %324 = vmatprep.mubr.f32.mxu0 %v256
    %325 = vmatmul.mubr.f32.gmra.mrb[0].mxu0 %v43
    %v326 = vpop.f32.mrb[0].mxu0
    %v327 = vadd.f32 %v242, %v326
    %v328 = vpop.f32.mrb[0].mxu0
    %v329 = vadd.f32 %v246, %v328
    %330 = vdwg.mxu0
    %331 = vmatprep.subr.mxu0 %v142
    %332 = vmatpush1.msra.mxu0 %v141
    %333 = vmatprep.subr.mxu0 %v145
    %334 = vmatpush1.msra.mxu0 %v144
    %335 = vmatprep.subr.mxu0 %v148
    %336 = vmatpush1.msra.mxu0 %v147
    %337 = vmatprep.subr.mxu0 %v151
    %338 = vmatpush1.msra.mxu0 %v150
    %339 = vmatprep.subr.mxu0 %v154
    %340 = vmatpush1.msra.mxu0 %v153
    %341 = vmatprep.subr.mxu0 %v157
    %342 = vmatpush1.msra.mxu0 %v156
    %343 = vmatprep.subr.mxu0 %v160
    %344 = vmatpush1.msra.mxu0 %v159
    %345 = vmatprep.subr.mxu0 %v163
    %346 = vmatpush1.msra.mxu0 %v162
    %347 = vmatprep.subr.mxu0 %v166
    %348 = vmatpush1.msra.mxu0 %v165
    %349 = vmatprep.subr.mxu0 %v169
    %350 = vmatpush1.msra.mxu0 %v168
    %351 = vmatprep.subr.mxu0 %v172
    %352 = vmatpush1.msra.mxu0 %v171
    %353 = vmatprep.subr.mxu0 %v175
    %354 = vmatpush1.msra.mxu0 %v174
    %355 = vmatprep.subr.mxu0 %v178
    %356 = vmatpush1.msra.mxu0 %v177
    %357 = vmatprep.subr.mxu0 %v181
    %358 = vmatpush1.msra.mxu0 %v180
    %359 = vmatprep.subr.mxu0 %v184
    %360 = vmatpush1.msra.mxu0 %v183
    %361 = vmatprep.subr.mxu0 %v187
    %362 = vmatpush1.msra.mxu0 %v186
    %363 = vmatprep.subr.mxu0 %v190
    %364 = vmatpush1.msra.mxu0 %v189
    %365 = vmatprep.subr.mxu0 %v193
    %366 = vmatpush1.msra.mxu0 %v192
    %367 = vmatprep.subr.mxu0 %v196
    %368 = vmatpush1.msra.mxu0 %v195
    %369 = vmatprep.subr.mxu0 %v199
    %370 = vmatpush1.msra.mxu0 %v198
    %371 = vmatprep.subr.mxu0 %v202
    %372 = vmatpush1.msra.mxu0 %v201
    %373 = vmatprep.subr.mxu0 %v205
    %374 = vmatpush1.msra.mxu0 %v204
    %375 = vmatprep.subr.mxu0 %v208
    %376 = vmatpush1.msra.mxu0 %v207
    %377 = vmatprep.subr.mxu0 %v211
    %378 = vmatpush1.msra.mxu0 %v210
    %379 = vmatprep.subr.mxu0 %v214
    %380 = vmatpush1.msra.mxu0 %v213
    %381 = vmatprep.subr.mxu0 %v217
    %382 = vmatpush1.msra.mxu0 %v216
    %383 = vmatprep.subr.mxu0 %v220
    %384 = vmatpush1.msra.mxu0 %v219
    %385 = vmatprep.subr.mxu0 %v223
    %386 = vmatpush1.msra.mxu0 %v222
    %387 = vmatprep.subr.mxu0 %v226
    %388 = vmatpush1.msra.mxu0 %v225
    %389 = vmatprep.subr.mxu0 %v229
    %390 = vmatpush1.msra.mxu0 %v228
    %391 = vmatprep.subr.mxu0 %v232
    %392 = vmatpush1.msra.mxu0 %v231
    %393 = vmatprep.subr.mxu0 %v235
    %394 = vmatpush1.msra.mxu0 %v234
    %395 = vmatprep.mubr.f32.mxu0 %v257
    %396 = vmatmul.mubr.f32.gmra.mrb[0].mxu0 %v44
    %v397 = vpop.f32.mrb[0].mxu0
    %v398 = vadd.f32 %v327, %v397
    %v399 = vpop.f32.mrb[0].mxu0
    %v400 = vadd.f32 %v329, %v399
    %401 = vdwg.mxu0
    %402 = vmatprep.subr.mxu0 0.0
    %403 = vmatpush1.msra.mxu0 %v47
    %404 = vmatprep.subr.mxu0 0.0
    %405 = vmatpush1.msra.mxu0 %v50
    %406 = vmatprep.subr.mxu0 0.0
    %407 = vmatpush1.msra.mxu0 %v53
    %408 = vmatprep.subr.mxu0 0.0
    %409 = vmatpush1.msra.mxu0 %v56
    %410 = vmatprep.subr.mxu0 0.0
    %411 = vmatpush1.msra.mxu0 %v59
    %412 = vmatprep.subr.mxu0 0.0
    %413 = vmatpush1.msra.mxu0 %v62
    %414 = vmatprep.subr.mxu0 0.0
    %415 = vmatpush1.msra.mxu0 %v65
    %416 = vmatprep.subr.mxu0 0.0
    %417 = vmatpush1.msra.mxu0 %v68
    %418 = vmatprep.subr.mxu0 0.0
    %419 = vmatpush1.msra.mxu0 %v71
    %420 = vmatprep.subr.mxu0 0.0
    %421 = vmatpush1.msra.mxu0 %v74
    %422 = vmatprep.subr.mxu0 0.0
    %423 = vmatpush1.msra.mxu0 %v77
    %424 = vmatprep.subr.mxu0 0.0
    %425 = vmatpush1.msra.mxu0 %v80
    %426 = vmatprep.subr.mxu0 0.0
    %427 = vmatpush1.msra.mxu0 %v83
    %428 = vmatprep.subr.mxu0 0.0
    %429 = vmatpush1.msra.mxu0 %v86
    %430 = vmatprep.subr.mxu0 0.0
    %431 = vmatpush1.msra.mxu0 %v89
    %432 = vmatprep.subr.mxu0 0.0
    %433 = vmatpush1.msra.mxu0 %v92
    %434 = vmatprep.subr.mxu0 0.0
    %435 = vmatpush1.msra.mxu0 %v95
    %436 = vmatprep.subr.mxu0 0.0
    %437 = vmatpush1.msra.mxu0 %v98
    %438 = vmatprep.subr.mxu0 0.0
    %439 = vmatpush1.msra.mxu0 %v101
    %440 = vmatprep.subr.mxu0 0.0
    %441 = vmatpush1.msra.mxu0 %v104
    %442 = vmatprep.subr.mxu0 0.0
    %443 = vmatpush1.msra.mxu0 %v107
    %444 = vmatprep.subr.mxu0 0.0
    %445 = vmatpush1.msra.mxu0 %v110
    %446 = vmatprep.subr.mxu0 0.0
    %447 = vmatpush1.msra.mxu0 %v113
    %448 = vmatprep.subr.mxu0 0.0
    %449 = vmatpush1.msra.mxu0 %v116
    %450 = vmatprep.subr.mxu0 0.0
    %451 = vmatpush1.msra.mxu0 %v119
    %452 = vmatprep.subr.mxu0 0.0
    %453 = vmatpush1.msra.mxu0 %v122
    %454 = vmatprep.subr.mxu0 0.0
    %455 = vmatpush1.msra.mxu0 %v125
    %456 = vmatprep.subr.mxu0 0.0
    %457 = vmatpush1.msra.mxu0 %v128
    %458 = vmatprep.subr.mxu0 0.0
    %459 = vmatpush1.msra.mxu0 %v131
    %460 = vmatprep.subr.mxu0 0.0
    %461 = vmatpush1.msra.mxu0 %v134
    %462 = vmatprep.subr.mxu0 0.0
    %463 = vmatpush1.msra.mxu0 %v137
    %464 = vmatprep.subr.mxu0 0.0
    %465 = vmatpush1.msra.mxu0 %v140
    %466 = vmatprep.mubr.f32.mxu0 %v256
    %467 = vmatmul.mubr.f32.gmra.mrb[0].mxu0 %v43
    %v468 = vpop.f32.mrb[0].mxu0
    %v469 = vadd.f32 %v250, %v468
    %v470 = vpop.f32.mrb[0].mxu0
    %471 = vdwg.mxu0
    %472 = vmatprep.subr.mxu0 0.0
    %473 = vmatpush1.msra.mxu0 %v143
    %474 = vmatprep.subr.mxu0 0.0
    %475 = vmatpush1.msra.mxu0 %v146
    %476 = vmatprep.subr.mxu0 0.0
    %477 = vmatpush1.msra.mxu0 %v149
    %478 = vmatprep.subr.mxu0 0.0
    %479 = vmatpush1.msra.mxu0 %v152
    %480 = vmatprep.subr.mxu0 0.0
    %481 = vmatpush1.msra.mxu0 %v155
    %482 = vmatprep.subr.mxu0 0.0
    %483 = vmatpush1.msra.mxu0 %v158
    %484 = vmatprep.subr.mxu0 0.0
    %485 = vmatpush1.msra.mxu0 %v161
    %486 = vmatprep.subr.mxu0 0.0
    %487 = vmatpush1.msra.mxu0 %v164
    %488 = vmatprep.subr.mxu0 0.0
    %489 = vmatpush1.msra.mxu0 %v167
    %490 = vmatprep.subr.mxu0 0.0
    %491 = vmatpush1.msra.mxu0 %v170
    %492 = vmatprep.subr.mxu0 0.0
    %493 = vmatpush1.msra.mxu0 %v173
    %494 = vmatprep.subr.mxu0 0.0
    %495 = vmatpush1.msra.mxu0 %v176
    %496 = vmatprep.subr.mxu0 0.0
    %497 = vmatpush1.msra.mxu0 %v179
    %498 = vmatprep.subr.mxu0 0.0
    %499 = vmatpush1.msra.mxu0 %v182
    %500 = vmatprep.subr.mxu0 0.0
    %501 = vmatpush1.msra.mxu0 %v185
    %502 = vmatprep.subr.mxu0 0.0
    %503 = vmatpush1.msra.mxu0 %v188
    %504 = vmatprep.subr.mxu0 0.0
    %505 = vmatpush1.msra.mxu0 %v191
    %506 = vmatprep.subr.mxu0 0.0
    %507 = vmatpush1.msra.mxu0 %v194
    %508 = vmatprep.subr.mxu0 0.0
    %509 = vmatpush1.msra.mxu0 %v197
    %510 = vmatprep.subr.mxu0 0.0
    %511 = vmatpush1.msra.mxu0 %v200
    %512 = vmatprep.subr.mxu0 0.0
    %513 = vmatpush1.msra.mxu0 %v203
    %514 = vmatprep.subr.mxu0 0.0
    %515 = vmatpush1.msra.mxu0 %v206
    %516 = vmatprep.subr.mxu0 0.0
    %517 = vmatpush1.msra.mxu0 %v209
    %518 = vmatprep.subr.mxu0 0.0
    %519 = vmatpush1.msra.mxu0 %v212
    %520 = vmatprep.subr.mxu0 0.0
    %521 = vmatpush1.msra.mxu0 %v215
    %522 = vmatprep.subr.mxu0 0.0
    %523 = vmatpush1.msra.mxu0 %v218
    %524 = vmatprep.subr.mxu0 0.0
    %525 = vmatpush1.msra.mxu0 %v221
    %526 = vmatprep.subr.mxu0 0.0
    %527 = vmatpush1.msra.mxu0 %v224
    %528 = vmatprep.subr.mxu0 0.0
    %529 = vmatpush1.msra.mxu0 %v227
    %530 = vmatprep.subr.mxu0 0.0
    %531 = vmatpush1.msra.mxu0 %v230
    %532 = vmatprep.subr.mxu0 0.0
    %533 = vmatpush1.msra.mxu0 %v233
    %534 = vmatprep.subr.mxu0 0.0
    %535 = vmatpush1.msra.mxu0 %v236
    %536 = vmatprep.mubr.f32.mxu0 %v257
    %537 = vmatmul.mubr.f32.gmra.mrb[0].mxu0 %v44
    %v538 = vpop.f32.mrb[0].mxu0
    %v539 = vadd.f32 %v469, %v538
    %v540 = vpop.f32.mrb[0].mxu0
    %541 = vdwg.mxu0
    %v544 = vcombine.low %v398, %v400
    %546 = vst [vmem:[#allocation7] sm:$0xff] %v544
    %547 = vst [vmem:[#allocation7 + $0x8] sm:$0xf] %v539
    // Predicated region
    $region22: #{relu_fc_forward.1} parent=1 // pred_check
      _
    $region23: #{relu_fc_forward.1} parent=1 // pred_check_branch
      %549 = sbr.rel (0) target = $region25
    $region24: #{relu_fc_forward.1} parent=1 // pred_region
      %s551 = ssub.s32 192, 192
      %552 = vsyncadd [#allocation4], %s551
      %s554 = sshll.u32 [#allocation7], 4
      %s555 = int_to_ptr.vmem [resolvable:$true] %s554
      %557 = dma.vmem_to_hbm [thread:$0]  %s555, 192, %s3, [#allocation4]
    $region25: #{relu_fc_forward.1} parent=1 // pred_fallthru
      _
    // Predicated region
    $region26: #{relu_fc_forward.1} parent=1 // pred_check
      _
    $region27: #{relu_fc_forward.1} parent=1 // pred_check_branch
      %559 = sbr.rel (0) target = $region29
    $region28: #{relu_fc_forward.1} parent=1 // pred_region
      %560 = dma.done [#allocation4], 192
    $region29: #{relu_fc_forward.1} parent=1 // pred_fallthru
      _
    %561 = vsyncpa [#allocation3], 1
    %562 = vsyncpa [#allocation6], 1
    %563 = vsyncpa [#allocation4], 1

</llo_original>
